<compile_context>
chip_gen: v6e
topology: v6e:2x2x1
jax: 0.10.0
libtpu: 0.0.40
codegen_flags: <defaults>
</compile_context>

<pallas_src>
import jax
import jax.numpy as jnp
from jax.experimental import pallas as pl
from jax.experimental.pallas import tpu as pltpu


def _add_kernel(img_ref, noise_ref, out_ref):
    # Elementwise add on the current (tm, lanes) VMEM tile (pure VPU work;
    # the kernel is HBM-bandwidth bound).
    out_ref[...] = img_ref[...] + noise_ref[...]


def _pick_2d_view(total: int, last_dim: int):
    """Factor a contiguous buffer into (rows, lanes) with a wide, lane-dense
    (multiple-of-128) last dimension."""
    for lanes in (8192, 4096, 2048, 1024, 512, 256, 128):
        if total % lanes == 0:
            return total // lanes, lanes
    return total // last_dim, last_dim  # fallback: keep original last dim


def forward_process(image: jax.Array, noise: jax.Array) -> jax.Array:
    """Pallas equivalent of ForwardProcess.forward(): image + noise."""
    assert image.shape == noise.shape and image.dtype == noise.dtype
    orig_shape = image.shape
    total = image.size

    rows, lanes = _pick_2d_view(total, orig_shape[-1])
    img2d = image.reshape(rows, lanes)
    noise2d = noise.reshape(rows, lanes)

    # --- Tile selection -----------------------------------------------------
    # Cap one block at ~4 MiB per operand: 3 operands x 2 pipeline buffers x
    # 4 MiB = 24 MiB, under the scoped-VMEM default on every generation.
    itemsize = jnp.dtype(image.dtype).itemsize
    cap_rows = max(8, ((4 << 20) // (lanes * itemsize)) // 8 * 8)

    if rows % 16 == 0 and rows // 2 <= cap_rows:
        tm = rows // 2            # exactly 2 blocks -> feeds both v7x TCs
    elif rows % 8 == 0:
        tm = min(rows, cap_rows)  # biggest 8-aligned block under the cap
    else:
        tm = rows                 # full-extent block (satisfies (8,128) rule)

    grid = (pl.cdiv(rows, tm),)

    out2d = pl.pallas_call(
        _add_kernel,
        out_shape=jax.ShapeDtypeStruct((rows, lanes), image.dtype),
        grid_spec=pltpu.PrefetchScalarGridSpec(
            num_scalar_prefetch=0,
            grid=grid,
            in_specs=[
                pl.BlockSpec((tm, lanes), lambda i: (i, 0)),
                pl.BlockSpec((tm, lanes), lambda i: (i, 0)),
            ],
            out_specs=pl.BlockSpec((tm, lanes), lambda i: (i, 0)),
        ),
        compiler_params=pltpu.CompilerParams(
            dimension_semantics=("parallel",),
        ),
    )(img2d, noise2d)

    return out2d.reshape(orig_shape)


if __name__ == "__main__":
    # The module stores a fixed image and a fixed noise tensor drawn once at
    # construction time (torch.randn_like).  Build both deterministically here
    # at the exact shape the reference module uses.
    key = jax.random.PRNGKey(0)
    k_img, k_noise = jax.random.split(key)

    shape = (1, 3, 256, 256)  # matches `torch.randn(1, 3, 256, 256)`
    image = jax.random.normal(k_img, shape, dtype=jnp.float32)
    noise = jax.random.normal(k_noise, shape, dtype=jnp.float32)

    out = forward_process(image, noise)
    jax.block_until_ready(out)

    # Correctness check against plain-JAX reference.
    ref = image + noise
    assert out.shape == shape and out.dtype == jnp.float32
    assert jnp.allclose(out, ref, atol=1e-6, rtol=1e-6)

    print("KERNEL_OK")
</pallas_src>

<mosaic_0001>
module attributes {stable_mosaic.version = 11 : i64} {
  func.func @_add_kernel(%arg0: i32, %arg1: memref<24x8192xf32, #tpu.memory_space<vmem>>, %arg2: memref<24x8192xf32, #tpu.memory_space<vmem>>, %arg3: memref<24x8192xf32, #tpu.memory_space<vmem>>) attributes {dimension_semantics = [#tpu.dimension_semantics<parallel>], iteration_bounds = array<i64: 1>, scalar_prefetch = 0 : i64, scratch_operands = 0 : i64, tpu.core_type = #tpu.core_type<tc>, window_params = [{transform_indices = @transform_0, window_bounds = array<i64: 24, 8192>}, {transform_indices = @transform_1, window_bounds = array<i64: 24, 8192>}, {transform_indices = @transform_2, window_bounds = array<i64: 24, 8192>}]} {
    %c0 = arith.constant 0 : index
    %c0_0 = arith.constant 0 : index
    %0 = vector.load %arg1[%c0, %c0_0] : memref<24x8192xf32, #tpu.memory_space<vmem>>, vector<24x8192xf32>
    %c0_1 = arith.constant 0 : index
    %c0_2 = arith.constant 0 : index
    %1 = vector.load %arg2[%c0_1, %c0_2] : memref<24x8192xf32, #tpu.memory_space<vmem>>, vector<24x8192xf32>
    %2 = arith.addf %0, %1 : vector<24x8192xf32>
    %c0_3 = arith.constant 0 : index
    %c0_4 = arith.constant 0 : index
    %3 = vector.load %arg3[%c0_3, %c0_4] : memref<24x8192xf32, #tpu.memory_space<vmem>>, vector<24x8192xf32>
    tpu.vector_store %arg3[%c0_3, %c0_4], %2 {strides = array<i32>} : memref<24x8192xf32, #tpu.memory_space<vmem>>, vector<24x8192xf32>,
    return
  }
  func.func @transform_0(%arg0: i32) -> (i32, i32) {
    %c0_i32 = arith.constant 0 : i32
    %c0_i32_0 = arith.constant 0 : i32
    return %arg0, %c0_i32 : i32, i32
  }
  func.func @transform_1(%arg0: i32) -> (i32, i32) {
    %c0_i32 = arith.constant 0 : i32
    %c0_i32_0 = arith.constant 0 : i32
    return %arg0, %c0_i32 : i32, i32
  }
  func.func @transform_2(%arg0: i32) -> (i32, i32) {
    %c0_i32 = arith.constant 0 : i32
    %c0_i32_0 = arith.constant 0 : i32
    return %arg0, %c0_i32 : i32, i32
  }
}

</mosaic_0001>

<llo_original>
// kernel: tpu_custom_call.1
$region0: #{tpu_custom_call.1}
  #allocation0 [shape = 'u32[]', space=smem, size = 0x4, offset = 0x4, fixed_abs, tag = 'smem constant byte address 0x4 - core index']
  #allocation1 [shape = 'u32[144,128]{1,0:T(1,128)}', space=vmem, size = 0x12000, scoped, tag = 'internal scratch']
  %s0 = inlined_call_operand.hbm [shape: f32[24,8192], index: 0, kind: input, shape index: {}]
  %s1 = inlined_call_operand.hbm [shape: f32[24,8192], index: 1, kind: input, shape index: {}]
  %s2 = inlined_call_operand.hbm [shape: f32[24,8192], index: 2, kind: output, shape index: {}]
  %s3 = sld [smem:[#allocation0]]
  $region26: #{tpu_custom_call.1} parent=0
    _
  %s5 = ssub.s32 1, %s3
  %s6 = scalar_select 0, %s5, %s3
  $region1: #{tpu_custom_call.1} parent=0
    #allocation2 [shape = 'u8[786432]{0}', space=vmem, size = 0xc0000, scoped, tag = 'input window, operand 0, single buffered']
    #allocation3 [shape = 's32[1]{0}', space=sflag, size = 0x4, scoped, tag = 'scoped memory for tpu_custom_call.1']
    #allocation4 [shape = 's32[1]{0}', space=sflag, size = 0x4, scoped, tag = 'scoped memory for tpu_custom_call.1']
    #allocation5 [shape = 'u8[786432]{0}', space=vmem, size = 0xc0000, scoped, tag = 'input window, operand 1, single buffered']
    #allocation6 [shape = 's32[1]{0}', space=sflag, size = 0x4, scoped, tag = 'scoped memory for tpu_custom_call.1']
    #allocation7 [shape = 'u8[786432]{0}', space=vmem, size = 0xc0000, scoped, tag = 'output window, operand 0, single buffered']
    %7 = vsyncpa [#allocation3], 0
    %8 = vsyncpa [#allocation6], 0
    %9 = vsyncpa [#allocation4], 0
    // Predicated region
    $region2: #{tpu_custom_call.1} parent=1 // pred_check
      _
    $region3: #{tpu_custom_call.1} parent=1 // pred_check_branch
      %11 = sbr.rel (0) target = $region5
    $region4: #{tpu_custom_call.1} parent=1 // pred_region
      %s13 = ssub.s32 24576, 24576
      %14 = vsyncadd [#allocation3], %s13
      %s15 = sshll.u32 [#allocation2], 4
      %s16 = int_to_ptr.vmem [resolvable:$true] %s15
      %21 = dma.hbm_to_vmem [thread:$0]  %s0, 24576, %s16, [#allocation3], 8192, 8192, 512
    $region5: #{tpu_custom_call.1} parent=1 // pred_fallthru
      _
    // Predicated region
    $region6: #{tpu_custom_call.1} parent=1 // pred_check
      _
    $region7: #{tpu_custom_call.1} parent=1 // pred_check_branch
      %23 = sbr.rel (0) target = $region9
    $region8: #{tpu_custom_call.1} parent=1 // pred_region
      %s25 = ssub.s32 24576, 24576
      %26 = vsyncadd [#allocation6], %s25
      %s27 = sshll.u32 [#allocation5], 4
      %s28 = int_to_ptr.vmem [resolvable:$true] %s27
      %33 = dma.hbm_to_vmem [thread:$0]  %s1, 24576, %s28, [#allocation6], 8192, 8192, 512
    $region9: #{tpu_custom_call.1} parent=1 // pred_fallthru
      _
    // Predicated region
    $region10: #{tpu_custom_call.1} parent=1 // pred_check
      _
    $region11: #{tpu_custom_call.1} parent=1 // pred_check_branch
      %35 = sbr.rel (0) target = $region13
    $region12: #{tpu_custom_call.1} parent=1 // pred_region
      %36 = dma.done [#allocation3], 24576
    $region13: #{tpu_custom_call.1} parent=1 // pred_fallthru
      _
    // Predicated region
    $region14: #{tpu_custom_call.1} parent=1 // pred_check
      _
    $region15: #{tpu_custom_call.1} parent=1 // pred_check_branch
      %38 = sbr.rel (0) target = $region17
    $region16: #{tpu_custom_call.1} parent=1 // pred_region
      %39 = dma.done [#allocation6], 24576
    $region17: #{tpu_custom_call.1} parent=1 // pred_fallthru
      _
    %v40 = vld [vmem:[#allocation2] sm:$0xff]
    %v41 = vld [vmem:[#allocation2 + $0x8] sm:$0xff]
    %v42 = vld [vmem:[#allocation2 + $0x10] sm:$0xff]
    %v43 = vld [vmem:[#allocation2 + $0x18] sm:$0xff]
    %v44 = vld [vmem:[#allocation2 + $0x20] sm:$0xff]
    %v45 = vld [vmem:[#allocation2 + $0x28] sm:$0xff]
    %v46 = vld [vmem:[#allocation2 + $0x30] sm:$0xff]
    %v47 = vld [vmem:[#allocation2 + $0x38] sm:$0xff]
    %v48 = vld [vmem:[#allocation2 + $0x40] sm:$0xff]
    %v49 = vld [vmem:[#allocation2 + $0x48] sm:$0xff]
    %v50 = vld [vmem:[#allocation2 + $0x50] sm:$0xff]
    %v51 = vld [vmem:[#allocation2 + $0x58] sm:$0xff]
    %v52 = vld [vmem:[#allocation2 + $0x60] sm:$0xff]
    %v53 = vld [vmem:[#allocation2 + $0x68] sm:$0xff]
    %v54 = vld [vmem:[#allocation2 + $0x70] sm:$0xff]
    %v55 = vld [vmem:[#allocation2 + $0x78] sm:$0xff]
    %v56 = vld [vmem:[#allocation2 + $0x80] sm:$0xff]
    %v57 = vld [vmem:[#allocation2 + $0x88] sm:$0xff]
    %v58 = vld [vmem:[#allocation2 + $0x90] sm:$0xff]
    %v59 = vld [vmem:[#allocation2 + $0x98] sm:$0xff]
    %v60 = vld [vmem:[#allocation2 + $0xa0] sm:$0xff]
    %v61 = vld [vmem:[#allocation2 + $0xa8] sm:$0xff]
    %v62 = vld [vmem:[#allocation2 + $0xb0] sm:$0xff]
    %v63 = vld [vmem:[#allocation2 + $0xb8] sm:$0xff]
    %v64 = vld [vmem:[#allocation2 + $0xc0] sm:$0xff]
    %v65 = vld [vmem:[#allocation2 + $0xc8] sm:$0xff]
    %v66 = vld [vmem:[#allocation2 + $0xd0] sm:$0xff]
    %v67 = vld [vmem:[#allocation2 + $0xd8] sm:$0xff]
    %v68 = vld [vmem:[#allocation2 + $0xe0] sm:$0xff]
    %v69 = vld [vmem:[#allocation2 + $0xe8] sm:$0xff]
    %v70 = vld [vmem:[#allocation2 + $0xf0] sm:$0xff]
    %v71 = vld [vmem:[#allocation2 + $0xf8] sm:$0xff]
    %v72 = vld [vmem:[#allocation2 + $0x100] sm:$0xff]
    %v73 = vld [vmem:[#allocation2 + $0x108] sm:$0xff]
    %v74 = vld [vmem:[#allocation2 + $0x110] sm:$0xff]
    %v75 = vld [vmem:[#allocation2 + $0x118] sm:$0xff]
    %v76 = vld [vmem:[#allocation2 + $0x120] sm:$0xff]
    %v77 = vld [vmem:[#allocation2 + $0x128] sm:$0xff]
    %v78 = vld [vmem:[#allocation2 + $0x130] sm:$0xff]
    %v79 = vld [vmem:[#allocation2 + $0x138] sm:$0xff]
    %v80 = vld [vmem:[#allocation2 + $0x140] sm:$0xff]
    %v81 = vld [vmem:[#allocation2 + $0x148] sm:$0xff]
    %v82 = vld [vmem:[#allocation2 + $0x150] sm:$0xff]
    %v83 = vld [vmem:[#allocation2 + $0x158] sm:$0xff]
    %v84 = vld [vmem:[#allocation2 + $0x160] sm:$0xff]
    %v85 = vld [vmem:[#allocation2 + $0x168] sm:$0xff]
    %v86 = vld [vmem:[#allocation2 + $0x170] sm:$0xff]
    %v87 = vld [vmem:[#allocation2 + $0x178] sm:$0xff]
    %v88 = vld [vmem:[#allocation2 + $0x180] sm:$0xff]
    %v89 = vld [vmem:[#allocation2 + $0x188] sm:$0xff]
    %v90 = vld [vmem:[#allocation2 + $0x190] sm:$0xff]
    %v91 = vld [vmem:[#allocation2 + $0x198] sm:$0xff]
    %v92 = vld [vmem:[#allocation2 + $0x1a0] sm:$0xff]
    %v93 = vld [vmem:[#allocation2 + $0x1a8] sm:$0xff]
    %v94 = vld [vmem:[#allocation2 + $0x1b0] sm:$0xff]
    %v95 = vld [vmem:[#allocation2 + $0x1b8] sm:$0xff]
    %v96 = vld [vmem:[#allocation2 + $0x1c0] sm:$0xff]
    %v97 = vld [vmem:[#allocation2 + $0x1c8] sm:$0xff]
    %v98 = vld [vmem:[#allocation2 + $0x1d0] sm:$0xff]
    %v99 = vld [vmem:[#allocation2 + $0x1d8] sm:$0xff]
    %v100 = vld [vmem:[#allocation2 + $0x1e0] sm:$0xff]
    %v101 = vld [vmem:[#allocation2 + $0x1e8] sm:$0xff]
    %v102 = vld [vmem:[#allocation2 + $0x1f0] sm:$0xff]
    %v103 = vld [vmem:[#allocation2 + $0x1f8] sm:$0xff]
    %v104 = vld [vmem:[#allocation2 + $0x200] sm:$0xff]
    %v105 = vld [vmem:[#allocation2 + $0x208] sm:$0xff]
    %v106 = vld [vmem:[#allocation2 + $0x210] sm:$0xff]
    %v107 = vld [vmem:[#allocation2 + $0x218] sm:$0xff]
    %v108 = vld [vmem:[#allocation2 + $0x220] sm:$0xff]
    %v109 = vld [vmem:[#allocation2 + $0x228] sm:$0xff]
    %v110 = vld [vmem:[#allocation2 + $0x230] sm:$0xff]
    %v111 = vld [vmem:[#allocation2 + $0x238] sm:$0xff]
    %v112 = vld [vmem:[#allocation2 + $0x240] sm:$0xff]
    %v113 = vld [vmem:[#allocation2 + $0x248] sm:$0xff]
    %v114 = vld [vmem:[#allocation2 + $0x250] sm:$0xff]
    %v115 = vld [vmem:[#allocation2 + $0x258] sm:$0xff]
    %v116 = vld [vmem:[#allocation2 + $0x260] sm:$0xff]
    %v117 = vld [vmem:[#allocation2 + $0x268] sm:$0xff]
    %v118 = vld [vmem:[#allocation2 + $0x270] sm:$0xff]
    %v119 = vld [vmem:[#allocation2 + $0x278] sm:$0xff]
    %v120 = vld [vmem:[#allocation2 + $0x280] sm:$0xff]
    %v121 = vld [vmem:[#allocation2 + $0x288] sm:$0xff]
    %v122 = vld [vmem:[#allocation2 + $0x290] sm:$0xff]
    %v123 = vld [vmem:[#allocation2 + $0x298] sm:$0xff]
    %v124 = vld [vmem:[#allocation2 + $0x2a0] sm:$0xff]
    %v125 = vld [vmem:[#allocation2 + $0x2a8] sm:$0xff]
    %v126 = vld [vmem:[#allocation2 + $0x2b0] sm:$0xff]
    %v127 = vld [vmem:[#allocation2 + $0x2b8] sm:$0xff]
    %v128 = vld [vmem:[#allocation2 + $0x2c0] sm:$0xff]
    %v129 = vld [vmem:[#allocation2 + $0x2c8] sm:$0xff]
    %v130 = vld [vmem:[#allocation2 + $0x2d0] sm:$0xff]
    %v131 = vld [vmem:[#allocation2 + $0x2d8] sm:$0xff]
    %v132 = vld [vmem:[#allocation2 + $0x2e0] sm:$0xff]
    %v133 = vld [vmem:[#allocation2 + $0x2e8] sm:$0xff]
    %v134 = vld [vmem:[#allocation2 + $0x2f0] sm:$0xff]
    %v135 = vld [vmem:[#allocation2 + $0x2f8] sm:$0xff]
    %v136 = vld [vmem:[#allocation2 + $0x300] sm:$0xff]
    %v137 = vld [vmem:[#allocation2 + $0x308] sm:$0xff]
    %v138 = vld [vmem:[#allocation2 + $0x310] sm:$0xff]
    %v139 = vld [vmem:[#allocation2 + $0x318] sm:$0xff]
    %v140 = vld [vmem:[#allocation2 + $0x320] sm:$0xff]
    %v141 = vld [vmem:[#allocation2 + $0x328] sm:$0xff]
    %v142 = vld [vmem:[#allocation2 + $0x330] sm:$0xff]
    %v143 = vld [vmem:[#allocation2 + $0x338] sm:$0xff]
    %v144 = vld [vmem:[#allocation2 + $0x340] sm:$0xff]
    %v145 = vld [vmem:[#allocation2 + $0x348] sm:$0xff]
    %v146 = vld [vmem:[#allocation2 + $0x350] sm:$0xff]
    %v147 = vld [vmem:[#allocation2 + $0x358] sm:$0xff]
    %v148 = vld [vmem:[#allocation2 + $0x360] sm:$0xff]
    %v149 = vld [vmem:[#allocation2 + $0x368] sm:$0xff]
    %v150 = vld [vmem:[#allocation2 + $0x370] sm:$0xff]
    %v151 = vld [vmem:[#allocation2 + $0x378] sm:$0xff]
    %v152 = vld [vmem:[#allocation2 + $0x380] sm:$0xff]
    %v153 = vld [vmem:[#allocation2 + $0x388] sm:$0xff]
    %v154 = vld [vmem:[#allocation2 + $0x390] sm:$0xff]
    %v155 = vld [vmem:[#allocation2 + $0x398] sm:$0xff]
    %v156 = vld [vmem:[#allocation2 + $0x3a0] sm:$0xff]
    %v157 = vld [vmem:[#allocation2 + $0x3a8] sm:$0xff]
    %v158 = vld [vmem:[#allocation2 + $0x3b0] sm:$0xff]
    %v159 = vld [vmem:[#allocation2 + $0x3b8] sm:$0xff]
    %v160 = vld [vmem:[#allocation2 + $0x3c0] sm:$0xff]
    %v161 = vld [vmem:[#allocation2 + $0x3c8] sm:$0xff]
    %v162 = vld [vmem:[#allocation2 + $0x3d0] sm:$0xff]
    %v163 = vld [vmem:[#allocation2 + $0x3d8] sm:$0xff]
    %v164 = vld [vmem:[#allocation2 + $0x3e0] sm:$0xff]
    %v165 = vld [vmem:[#allocation2 + $0x3e8] sm:$0xff]
    %v166 = vld [vmem:[#allocation2 + $0x3f0] sm:$0xff]
    %v167 = vld [vmem:[#allocation2 + $0x3f8] sm:$0xff]
    %v168 = vld [vmem:[#allocation2 + $0x400] sm:$0xff]
    %v169 = vld [vmem:[#allocation2 + $0x408] sm:$0xff]
    %v170 = vld [vmem:[#allocation2 + $0x410] sm:$0xff]
    %v171 = vld [vmem:[#allocation2 + $0x418] sm:$0xff]
    %v172 = vld [vmem:[#allocation2 + $0x420] sm:$0xff]
    %v173 = vld [vmem:[#allocation2 + $0x428] sm:$0xff]
    %v174 = vld [vmem:[#allocation2 + $0x430] sm:$0xff]
    %v175 = vld [vmem:[#allocation2 + $0x438] sm:$0xff]
    %v176 = vld [vmem:[#allocation2 + $0x440] sm:$0xff]
    %v177 = vld [vmem:[#allocation2 + $0x448] sm:$0xff]
    %v178 = vld [vmem:[#allocation2 + $0x450] sm:$0xff]
    %v179 = vld [vmem:[#allocation2 + $0x458] sm:$0xff]
    %v180 = vld [vmem:[#allocation2 + $0x460] sm:$0xff]
    %v181 = vld [vmem:[#allocation2 + $0x468] sm:$0xff]
    %v182 = vld [vmem:[#allocation2 + $0x470] sm:$0xff]
    %v183 = vld [vmem:[#allocation2 + $0x478] sm:$0xff]
    %v184 = vld [vmem:[#allocation2 + $0x480] sm:$0xff]
    %v185 = vld [vmem:[#allocation2 + $0x488] sm:$0xff]
    %v186 = vld [vmem:[#allocation2 + $0x490] sm:$0xff]
    %v187 = vld [vmem:[#allocation2 + $0x498] sm:$0xff]
    %v188 = vld [vmem:[#allocation2 + $0x4a0] sm:$0xff]
    %v189 = vld [vmem:[#allocation2 + $0x4a8] sm:$0xff]
    %v190 = vld [vmem:[#allocation2 + $0x4b0] sm:$0xff]
    %v191 = vld [vmem:[#allocation2 + $0x4b8] sm:$0xff]
    %v192 = vld [vmem:[#allocation2 + $0x4c0] sm:$0xff]
    %v193 = vld [vmem:[#allocation2 + $0x4c8] sm:$0xff]
    %v194 = vld [vmem:[#allocation2 + $0x4d0] sm:$0xff]
    %v195 = vld [vmem:[#allocation2 + $0x4d8] sm:$0xff]
    %v196 = vld [vmem:[#allocation2 + $0x4e0] sm:$0xff]
    %v197 = vld [vmem:[#allocation2 + $0x4e8] sm:$0xff]
    %v198 = vld [vmem:[#allocation2 + $0x4f0] sm:$0xff]
    %v199 = vld [vmem:[#allocation2 + $0x4f8] sm:$0xff]
    %v200 = vld [vmem:[#allocation2 + $0x500] sm:$0xff]
    %v201 = vld [vmem:[#allocation2 + $0x508] sm:$0xff]
    %v202 = vld [vmem:[#allocation2 + $0x510] sm:$0xff]
    %v203 = vld [vmem:[#allocation2 + $0x518] sm:$0xff]
    %v204 = vld [vmem:[#allocation2 + $0x520] sm:$0xff]
    %v205 = vld [vmem:[#allocation2 + $0x528] sm:$0xff]
    %v206 = vld [vmem:[#allocation2 + $0x530] sm:$0xff]
    %v207 = vld [vmem:[#allocation2 + $0x538] sm:$0xff]
    %v208 = vld [vmem:[#allocation2 + $0x540] sm:$0xff]
    %v209 = vld [vmem:[#allocation2 + $0x548] sm:$0xff]
    %v210 = vld [vmem:[#allocation2 + $0x550] sm:$0xff]
    %v211 = vld [vmem:[#allocation2 + $0x558] sm:$0xff]
    %v212 = vld [vmem:[#allocation2 + $0x560] sm:$0xff]
    %v213 = vld [vmem:[#allocation2 + $0x568] sm:$0xff]
    %v214 = vld [vmem:[#allocation2 + $0x570] sm:$0xff]
    %v215 = vld [vmem:[#allocation2 + $0x578] sm:$0xff]
    %v216 = vld [vmem:[#allocation2 + $0x580] sm:$0xff]
    %v217 = vld [vmem:[#allocation2 + $0x588] sm:$0xff]
    %v218 = vld [vmem:[#allocation2 + $0x590] sm:$0xff]
    %v219 = vld [vmem:[#allocation2 + $0x598] sm:$0xff]
    %v220 = vld [vmem:[#allocation2 + $0x5a0] sm:$0xff]
    %v221 = vld [vmem:[#allocation2 + $0x5a8] sm:$0xff]
    %v222 = vld [vmem:[#allocation2 + $0x5b0] sm:$0xff]
    %v223 = vld [vmem:[#allocation2 + $0x5b8] sm:$0xff]
    %v224 = vld [vmem:[#allocation2 + $0x5c0] sm:$0xff]
    %v225 = vld [vmem:[#allocation2 + $0x5c8] sm:$0xff]
    %v226 = vld [vmem:[#allocation2 + $0x5d0] sm:$0xff]
    %v227 = vld [vmem:[#allocation2 + $0x5d8] sm:$0xff]
    %v228 = vld [vmem:[#allocation2 + $0x5e0] sm:$0xff]
    %v229 = vld [vmem:[#allocation2 + $0x5e8] sm:$0xff]
    %v230 = vld [vmem:[#allocation2 + $0x5f0] sm:$0xff]
    %v231 = vld [vmem:[#allocation2 + $0x5f8] sm:$0xff]
    %v232 = vld [vmem:[#allocation5] sm:$0xff]
    %v233 = vld [vmem:[#allocation5 + $0x8] sm:$0xff]
    %v234 = vld [vmem:[#allocation5 + $0x10] sm:$0xff]
    %v235 = vld [vmem:[#allocation5 + $0x18] sm:$0xff]
    %v236 = vld [vmem:[#allocation5 + $0x20] sm:$0xff]
    %v237 = vld [vmem:[#allocation5 + $0x28] sm:$0xff]
    %v238 = vld [vmem:[#allocation5 + $0x30] sm:$0xff]
    %v239 = vld [vmem:[#allocation5 + $0x38] sm:$0xff]
    %v240 = vld [vmem:[#allocation5 + $0x40] sm:$0xff]
    %v241 = vld [vmem:[#allocation5 + $0x48] sm:$0xff]
    %v242 = vld [vmem:[#allocation5 + $0x50] sm:$0xff]
    %v243 = vld [vmem:[#allocation5 + $0x58] sm:$0xff]
    %v244 = vld [vmem:[#allocation5 + $0x60] sm:$0xff]
    %v245 = vld [vmem:[#allocation5 + $0x68] sm:$0xff]
    %v246 = vld [vmem:[#allocation5 + $0x70] sm:$0xff]
    %v247 = vld [vmem:[#allocation5 + $0x78] sm:$0xff]
    %v248 = vld [vmem:[#allocation5 + $0x80] sm:$0xff]
    %v249 = vld [vmem:[#allocation5 + $0x88] sm:$0xff]
    %v250 = vld [vmem:[#allocation5 + $0x90] sm:$0xff]
    %v251 = vld [vmem:[#allocation5 + $0x98] sm:$0xff]
    %v252 = vld [vmem:[#allocation5 + $0xa0] sm:$0xff]
    %v253 = vld [vmem:[#allocation5 + $0xa8] sm:$0xff]
    %v254 = vld [vmem:[#allocation5 + $0xb0] sm:$0xff]
    %v255 = vld [vmem:[#allocation5 + $0xb8] sm:$0xff]
    %v256 = vld [vmem:[#allocation5 + $0xc0] sm:$0xff]
    %v257 = vld [vmem:[#allocation5 + $0xc8] sm:$0xff]
    %v258 = vld [vmem:[#allocation5 + $0xd0] sm:$0xff]
    %v259 = vld [vmem:[#allocation5 + $0xd8] sm:$0xff]
    %v260 = vld [vmem:[#allocation5 + $0xe0] sm:$0xff]
    %v261 = vld [vmem:[#allocation5 + $0xe8] sm:$0xff]
    %v262 = vld [vmem:[#allocation5 + $0xf0] sm:$0xff]
    %v263 = vld [vmem:[#allocation5 + $0xf8] sm:$0xff]
    %v264 = vld [vmem:[#allocation5 + $0x100] sm:$0xff]
    %v265 = vld [vmem:[#allocation5 + $0x108] sm:$0xff]
    %v266 = vld [vmem:[#allocation5 + $0x110] sm:$0xff]
    %v267 = vld [vmem:[#allocation5 + $0x118] sm:$0xff]
    %v268 = vld [vmem:[#allocation5 + $0x120] sm:$0xff]
    %v269 = vld [vmem:[#allocation5 + $0x128] sm:$0xff]
    %v270 = vld [vmem:[#allocation5 + $0x130] sm:$0xff]
    %v271 = vld [vmem:[#allocation5 + $0x138] sm:$0xff]
    %v272 = vld [vmem:[#allocation5 + $0x140] sm:$0xff]
    %v273 = vld [vmem:[#allocation5 + $0x148] sm:$0xff]
    %v274 = vld [vmem:[#allocation5 + $0x150] sm:$0xff]
    %v275 = vld [vmem:[#allocation5 + $0x158] sm:$0xff]
    %v276 = vld [vmem:[#allocation5 + $0x160] sm:$0xff]
    %v277 = vld [vmem:[#allocation5 + $0x168] sm:$0xff]
    %v278 = vld [vmem:[#allocation5 + $0x170] sm:$0xff]
    %v279 = vld [vmem:[#allocation5 + $0x178] sm:$0xff]
    %v280 = vld [vmem:[#allocation5 + $0x180] sm:$0xff]
    %v281 = vld [vmem:[#allocation5 + $0x188] sm:$0xff]
    %v282 = vld [vmem:[#allocation5 + $0x190] sm:$0xff]
    %v283 = vld [vmem:[#allocation5 + $0x198] sm:$0xff]
    %v284 = vld [vmem:[#allocation5 + $0x1a0] sm:$0xff]
    %v285 = vld [vmem:[#allocation5 + $0x1a8] sm:$0xff]
    %v286 = vld [vmem:[#allocation5 + $0x1b0] sm:$0xff]
    %v287 = vld [vmem:[#allocation5 + $0x1b8] sm:$0xff]
    %v288 = vld [vmem:[#allocation5 + $0x1c0] sm:$0xff]
    %v289 = vld [vmem:[#allocation5 + $0x1c8] sm:$0xff]
    %v290 = vld [vmem:[#allocation5 + $0x1d0] sm:$0xff]
    %v291 = vld [vmem:[#allocation5 + $0x1d8] sm:$0xff]
    %v292 = vld [vmem:[#allocation5 + $0x1e0] sm:$0xff]
    %v293 = vld [vmem:[#allocation5 + $0x1e8] sm:$0xff]
    %v294 = vld [vmem:[#allocation5 + $0x1f0] sm:$0xff]
    %v295 = vld [vmem:[#allocation5 + $0x1f8] sm:$0xff]
    %v296 = vld [vmem:[#allocation5 + $0x200] sm:$0xff]
    %v297 = vld [vmem:[#allocation5 + $0x208] sm:$0xff]
    %v298 = vld [vmem:[#allocation5 + $0x210] sm:$0xff]
    %v299 = vld [vmem:[#allocation5 + $0x218] sm:$0xff]
    %v300 = vld [vmem:[#allocation5 + $0x220] sm:$0xff]
    %v301 = vld [vmem:[#allocation5 + $0x228] sm:$0xff]
    %v302 = vld [vmem:[#allocation5 + $0x230] sm:$0xff]
    %v303 = vld [vmem:[#allocation5 + $0x238] sm:$0xff]
    %v304 = vld [vmem:[#allocation5 + $0x240] sm:$0xff]
    %v305 = vld [vmem:[#allocation5 + $0x248] sm:$0xff]
    %v306 = vld [vmem:[#allocation5 + $0x250] sm:$0xff]
    %v307 = vld [vmem:[#allocation5 + $0x258] sm:$0xff]
    %v308 = vld [vmem:[#allocation5 + $0x260] sm:$0xff]
    %v309 = vld [vmem:[#allocation5 + $0x268] sm:$0xff]
    %v310 = vld [vmem:[#allocation5 + $0x270] sm:$0xff]
    %v311 = vld [vmem:[#allocation5 + $0x278] sm:$0xff]
    %v312 = vld [vmem:[#allocation5 + $0x280] sm:$0xff]
    %v313 = vld [vmem:[#allocation5 + $0x288] sm:$0xff]
    %v314 = vld [vmem:[#allocation5 + $0x290] sm:$0xff]
    %v315 = vld [vmem:[#allocation5 + $0x298] sm:$0xff]
    %v316 = vld [vmem:[#allocation5 + $0x2a0] sm:$0xff]
    %v317 = vld [vmem:[#allocation5 + $0x2a8] sm:$0xff]
    %v318 = vld [vmem:[#allocation5 + $0x2b0] sm:$0xff]
    %v319 = vld [vmem:[#allocation5 + $0x2b8] sm:$0xff]
    %v320 = vld [vmem:[#allocation5 + $0x2c0] sm:$0xff]
    %v321 = vld [vmem:[#allocation5 + $0x2c8] sm:$0xff]
    %v322 = vld [vmem:[#allocation5 + $0x2d0] sm:$0xff]
    %v323 = vld [vmem:[#allocation5 + $0x2d8] sm:$0xff]
    %v324 = vld [vmem:[#allocation5 + $0x2e0] sm:$0xff]
    %v325 = vld [vmem:[#allocation5 + $0x2e8] sm:$0xff]
    %v326 = vld [vmem:[#allocation5 + $0x2f0] sm:$0xff]
    %v327 = vld [vmem:[#allocation5 + $0x2f8] sm:$0xff]
    %v328 = vld [vmem:[#allocation5 + $0x300] sm:$0xff]
    %v329 = vld [vmem:[#allocation5 + $0x308] sm:$0xff]
    %v330 = vld [vmem:[#allocation5 + $0x310] sm:$0xff]
    %v331 = vld [vmem:[#allocation5 + $0x318] sm:$0xff]
    %v332 = vld [vmem:[#allocation5 + $0x320] sm:$0xff]
    %v333 = vld [vmem:[#allocation5 + $0x328] sm:$0xff]
    %v334 = vld [vmem:[#allocation5 + $0x330] sm:$0xff]
    %v335 = vld [vmem:[#allocation5 + $0x338] sm:$0xff]
    %v336 = vld [vmem:[#allocation5 + $0x340] sm:$0xff]
    %v337 = vld [vmem:[#allocation5 + $0x348] sm:$0xff]
    %v338 = vld [vmem:[#allocation5 + $0x350] sm:$0xff]
    %v339 = vld [vmem:[#allocation5 + $0x358] sm:$0xff]
    %v340 = vld [vmem:[#allocation5 + $0x360] sm:$0xff]
    %v341 = vld [vmem:[#allocation5 + $0x368] sm:$0xff]
    %v342 = vld [vmem:[#allocation5 + $0x370] sm:$0xff]
    %v343 = vld [vmem:[#allocation5 + $0x378] sm:$0xff]
    %v344 = vld [vmem:[#allocation5 + $0x380] sm:$0xff]
    %v345 = vld [vmem:[#allocation5 + $0x388] sm:$0xff]
    %v346 = vld [vmem:[#allocation5 + $0x390] sm:$0xff]
    %v347 = vld [vmem:[#allocation5 + $0x398] sm:$0xff]
    %v348 = vld [vmem:[#allocation5 + $0x3a0] sm:$0xff]
    %v349 = vld [vmem:[#allocation5 + $0x3a8] sm:$0xff]
    %v350 = vld [vmem:[#allocation5 + $0x3b0] sm:$0xff]
    %v351 = vld [vmem:[#allocation5 + $0x3b8] sm:$0xff]
    %v352 = vld [vmem:[#allocation5 + $0x3c0] sm:$0xff]
    %v353 = vld [vmem:[#allocation5 + $0x3c8] sm:$0xff]
    %v354 = vld [vmem:[#allocation5 + $0x3d0] sm:$0xff]
    %v355 = vld [vmem:[#allocation5 + $0x3d8] sm:$0xff]
    %v356 = vld [vmem:[#allocation5 + $0x3e0] sm:$0xff]
    %v357 = vld [vmem:[#allocation5 + $0x3e8] sm:$0xff]
    %v358 = vld [vmem:[#allocation5 + $0x3f0] sm:$0xff]
    %v359 = vld [vmem:[#allocation5 + $0x3f8] sm:$0xff]
    %v360 = vld [vmem:[#allocation5 + $0x400] sm:$0xff]
    %v361 = vld [vmem:[#allocation5 + $0x408] sm:$0xff]
    %v362 = vld [vmem:[#allocation5 + $0x410] sm:$0xff]
    %v363 = vld [vmem:[#allocation5 + $0x418] sm:$0xff]
    %v364 = vld [vmem:[#allocation5 + $0x420] sm:$0xff]
    %v365 = vld [vmem:[#allocation5 + $0x428] sm:$0xff]
    %v366 = vld [vmem:[#allocation5 + $0x430] sm:$0xff]
    %v367 = vld [vmem:[#allocation5 + $0x438] sm:$0xff]
    %v368 = vld [vmem:[#allocation5 + $0x440] sm:$0xff]
    %v369 = vld [vmem:[#allocation5 + $0x448] sm:$0xff]
    %v370 = vld [vmem:[#allocation5 + $0x450] sm:$0xff]
    %v371 = vld [vmem:[#allocation5 + $0x458] sm:$0xff]
    %v372 = vld [vmem:[#allocation5 + $0x460] sm:$0xff]
    %v373 = vld [vmem:[#allocation5 + $0x468] sm:$0xff]
    %v374 = vld [vmem:[#allocation5 + $0x470] sm:$0xff]
    %v375 = vld [vmem:[#allocation5 + $0x478] sm:$0xff]
    %v376 = vld [vmem:[#allocation5 + $0x480] sm:$0xff]
    %v377 = vld [vmem:[#allocation5 + $0x488] sm:$0xff]
    %v378 = vld [vmem:[#allocation5 + $0x490] sm:$0xff]
    %v379 = vld [vmem:[#allocation5 + $0x498] sm:$0xff]
    %v380 = vld [vmem:[#allocation5 + $0x4a0] sm:$0xff]
    %v381 = vld [vmem:[#allocation5 + $0x4a8] sm:$0xff]
    %v382 = vld [vmem:[#allocation5 + $0x4b0] sm:$0xff]
    %v383 = vld [vmem:[#allocation5 + $0x4b8] sm:$0xff]
    %v384 = vld [vmem:[#allocation5 + $0x4c0] sm:$0xff]
    %v385 = vld [vmem:[#allocation5 + $0x4c8] sm:$0xff]
    %v386 = vld [vmem:[#allocation5 + $0x4d0] sm:$0xff]
    %v387 = vld [vmem:[#allocation5 + $0x4d8] sm:$0xff]
    %v388 = vld [vmem:[#allocation5 + $0x4e0] sm:$0xff]
    %v389 = vld [vmem:[#allocation5 + $0x4e8] sm:$0xff]
    %v390 = vld [vmem:[#allocation5 + $0x4f0] sm:$0xff]
    %v391 = vld [vmem:[#allocation5 + $0x4f8] sm:$0xff]
    %v392 = vld [vmem:[#allocation5 + $0x500] sm:$0xff]
    %v393 = vld [vmem:[#allocation5 + $0x508] sm:$0xff]
    %v394 = vld [vmem:[#allocation5 + $0x510] sm:$0xff]
    %v395 = vld [vmem:[#allocation5 + $0x518] sm:$0xff]
    %v396 = vld [vmem:[#allocation5 + $0x520] sm:$0xff]
    %v397 = vld [vmem:[#allocation5 + $0x528] sm:$0xff]
    %v398 = vld [vmem:[#allocation5 + $0x530] sm:$0xff]
    %v399 = vld [vmem:[#allocation5 + $0x538] sm:$0xff]
    %v400 = vld [vmem:[#allocation5 + $0x540] sm:$0xff]
    %v401 = vld [vmem:[#allocation5 + $0x548] sm:$0xff]
    %v402 = vld [vmem:[#allocation5 + $0x550] sm:$0xff]
    %v403 = vld [vmem:[#allocation5 + $0x558] sm:$0xff]
    %v404 = vld [vmem:[#allocation5 + $0x560] sm:$0xff]
    %v405 = vld [vmem:[#allocation5 + $0x568] sm:$0xff]
    %v406 = vld [vmem:[#allocation5 + $0x570] sm:$0xff]
    %v407 = vld [vmem:[#allocation5 + $0x578] sm:$0xff]
    %v408 = vld [vmem:[#allocation5 + $0x580] sm:$0xff]
    %v409 = vld [vmem:[#allocation5 + $0x588] sm:$0xff]
    %v410 = vld [vmem:[#allocation5 + $0x590] sm:$0xff]
    %v411 = vld [vmem:[#allocation5 + $0x598] sm:$0xff]
    %v412 = vld [vmem:[#allocation5 + $0x5a0] sm:$0xff]
    %v413 = vld [vmem:[#allocation5 + $0x5a8] sm:$0xff]
    %v414 = vld [vmem:[#allocation5 + $0x5b0] sm:$0xff]
    %v415 = vld [vmem:[#allocation5 + $0x5b8] sm:$0xff]
    %v416 = vld [vmem:[#allocation5 + $0x5c0] sm:$0xff]
    %v417 = vld [vmem:[#allocation5 + $0x5c8] sm:$0xff]
    %v418 = vld [vmem:[#allocation5 + $0x5d0] sm:$0xff]
    %v419 = vld [vmem:[#allocation5 + $0x5d8] sm:$0xff]
    %v420 = vld [vmem:[#allocation5 + $0x5e0] sm:$0xff]
    %v421 = vld [vmem:[#allocation5 + $0x5e8] sm:$0xff]
    %v422 = vld [vmem:[#allocation5 + $0x5f0] sm:$0xff]
    %v423 = vld [vmem:[#allocation5 + $0x5f8] sm:$0xff]
    %v424 = vadd.f32 %v40, %v232
    %v425 = vadd.f32 %v41, %v233
    %v426 = vadd.f32 %v42, %v234
    %v427 = vadd.f32 %v43, %v235
    %v428 = vadd.f32 %v44, %v236
    %v429 = vadd.f32 %v45, %v237
    %v430 = vadd.f32 %v46, %v238
    %v431 = vadd.f32 %v47, %v239
    %v432 = vadd.f32 %v48, %v240
    %v433 = vadd.f32 %v49, %v241
    %v434 = vadd.f32 %v50, %v242
    %v435 = vadd.f32 %v51, %v243
    %v436 = vadd.f32 %v52, %v244
    %v437 = vadd.f32 %v53, %v245
    %v438 = vadd.f32 %v54, %v246
    %v439 = vadd.f32 %v55, %v247
    %v440 = vadd.f32 %v56, %v248
    %v441 = vadd.f32 %v57, %v249
    %v442 = vadd.f32 %v58, %v250
    %v443 = vadd.f32 %v59, %v251
    %v444 = vadd.f32 %v60, %v252
    %v445 = vadd.f32 %v61, %v253
    %v446 = vadd.f32 %v62, %v254
    %v447 = vadd.f32 %v63, %v255
    %v448 = vadd.f32 %v64, %v256
    %v449 = vadd.f32 %v65, %v257
    %v450 = vadd.f32 %v66, %v258
    %v451 = vadd.f32 %v67, %v259
    %v452 = vadd.f32 %v68, %v260
    %v453 = vadd.f32 %v69, %v261
    %v454 = vadd.f32 %v70, %v262
    %v455 = vadd.f32 %v71, %v263
    %v456 = vadd.f32 %v72, %v264
    %v457 = vadd.f32 %v73, %v265
    %v458 = vadd.f32 %v74, %v266
    %v459 = vadd.f32 %v75, %v267
    %v460 = vadd.f32 %v76, %v268
    %v461 = vadd.f32 %v77, %v269
    %v462 = vadd.f32 %v78, %v270
    %v463 = vadd.f32 %v79, %v271
    %v464 = vadd.f32 %v80, %v272
    %v465 = vadd.f32 %v81, %v273
    %v466 = vadd.f32 %v82, %v274
    %v467 = vadd.f32 %v83, %v275
    %v468 = vadd.f32 %v84, %v276
    %v469 = vadd.f32 %v85, %v277
    %v470 = vadd.f32 %v86, %v278
    %v471 = vadd.f32 %v87, %v279
    %v472 = vadd.f32 %v88, %v280
    %v473 = vadd.f32 %v89, %v281
    %v474 = vadd.f32 %v90, %v282
    %v475 = vadd.f32 %v91, %v283
    %v476 = vadd.f32 %v92, %v284
    %v477 = vadd.f32 %v93, %v285
    %v478 = vadd.f32 %v94, %v286
    %v479 = vadd.f32 %v95, %v287
    %v480 = vadd.f32 %v96, %v288
    %v481 = vadd.f32 %v97, %v289
    %v482 = vadd.f32 %v98, %v290
    %v483 = vadd.f32 %v99, %v291
    %v484 = vadd.f32 %v100, %v292
    %v485 = vadd.f32 %v101, %v293
    %v486 = vadd.f32 %v102, %v294
    %v487 = vadd.f32 %v103, %v295
    %v488 = vadd.f32 %v104, %v296
    %v489 = vadd.f32 %v105, %v297
    %v490 = vadd.f32 %v106, %v298
    %v491 = vadd.f32 %v107, %v299
    %v492 = vadd.f32 %v108, %v300
    %v493 = vadd.f32 %v109, %v301
    %v494 = vadd.f32 %v110, %v302
    %v495 = vadd.f32 %v111, %v303
    %v496 = vadd.f32 %v112, %v304
    %v497 = vadd.f32 %v113, %v305
    %v498 = vadd.f32 %v114, %v306
    %v499 = vadd.f32 %v115, %v307
    %v500 = vadd.f32 %v116, %v308
    %v501 = vadd.f32 %v117, %v309
    %v502 = vadd.f32 %v118, %v310
    %v503 = vadd.f32 %v119, %v311
    %v504 = vadd.f32 %v120, %v312
    %v505 = vadd.f32 %v121, %v313
    %v506 = vadd.f32 %v122, %v314
    %v507 = vadd.f32 %v123, %v315
    %v508 = vadd.f32 %v124, %v316
    %v509 = vadd.f32 %v125, %v317
    %v510 = vadd.f32 %v126, %v318
    %v511 = vadd.f32 %v127, %v319
    %v512 = vadd.f32 %v128, %v320
    %v513 = vadd.f32 %v129, %v321
    %v514 = vadd.f32 %v130, %v322
    %v515 = vadd.f32 %v131, %v323
    %v516 = vadd.f32 %v132, %v324
    %v517 = vadd.f32 %v133, %v325
    %v518 = vadd.f32 %v134, %v326
    %v519 = vadd.f32 %v135, %v327
    %v520 = vadd.f32 %v136, %v328
    %v521 = vadd.f32 %v137, %v329
    %v522 = vadd.f32 %v138, %v330
    %v523 = vadd.f32 %v139, %v331
    %v524 = vadd.f32 %v140, %v332
    %v525 = vadd.f32 %v141, %v333
    %v526 = vadd.f32 %v142, %v334
    %v527 = vadd.f32 %v143, %v335
    %v528 = vadd.f32 %v144, %v336
    %v529 = vadd.f32 %v145, %v337
    %v530 = vadd.f32 %v146, %v338
    %v531 = vadd.f32 %v147, %v339
    %v532 = vadd.f32 %v148, %v340
    %v533 = vadd.f32 %v149, %v341
    %v534 = vadd.f32 %v150, %v342
    %v535 = vadd.f32 %v151, %v343
    %v536 = vadd.f32 %v152, %v344
    %v537 = vadd.f32 %v153, %v345
    %v538 = vadd.f32 %v154, %v346
    %v539 = vadd.f32 %v155, %v347
    %v540 = vadd.f32 %v156, %v348
    %v541 = vadd.f32 %v157, %v349
    %v542 = vadd.f32 %v158, %v350
    %v543 = vadd.f32 %v159, %v351
    %v544 = vadd.f32 %v160, %v352
    %v545 = vadd.f32 %v161, %v353
    %v546 = vadd.f32 %v162, %v354
    %v547 = vadd.f32 %v163, %v355
    %v548 = vadd.f32 %v164, %v356
    %v549 = vadd.f32 %v165, %v357
    %v550 = vadd.f32 %v166, %v358
    %v551 = vadd.f32 %v167, %v359
    %v552 = vadd.f32 %v168, %v360
    %v553 = vadd.f32 %v169, %v361
    %v554 = vadd.f32 %v170, %v362
    %v555 = vadd.f32 %v171, %v363
    %v556 = vadd.f32 %v172, %v364
    %v557 = vadd.f32 %v173, %v365
    %v558 = vadd.f32 %v174, %v366
    %v559 = vadd.f32 %v175, %v367
    %v560 = vadd.f32 %v176, %v368
    %v561 = vadd.f32 %v177, %v369
    %v562 = vadd.f32 %v178, %v370
    %v563 = vadd.f32 %v179, %v371
    %v564 = vadd.f32 %v180, %v372
    %v565 = vadd.f32 %v181, %v373
    %v566 = vadd.f32 %v182, %v374
    %v567 = vadd.f32 %v183, %v375
    %v568 = vadd.f32 %v184, %v376
    %v569 = vadd.f32 %v185, %v377
    %v570 = vadd.f32 %v186, %v378
    %v571 = vadd.f32 %v187, %v379
    %v572 = vadd.f32 %v188, %v380
    %v573 = vadd.f32 %v189, %v381
    %v574 = vadd.f32 %v190, %v382
    %v575 = vadd.f32 %v191, %v383
    %v576 = vadd.f32 %v192, %v384
    %v577 = vadd.f32 %v193, %v385
    %v578 = vadd.f32 %v194, %v386
    %v579 = vadd.f32 %v195, %v387
    %v580 = vadd.f32 %v196, %v388
    %v581 = vadd.f32 %v197, %v389
    %v582 = vadd.f32 %v198, %v390
    %v583 = vadd.f32 %v199, %v391
    %v584 = vadd.f32 %v200, %v392
    %v585 = vadd.f32 %v201, %v393
    %v586 = vadd.f32 %v202, %v394
    %v587 = vadd.f32 %v203, %v395
    %v588 = vadd.f32 %v204, %v396
    %v589 = vadd.f32 %v205, %v397
    %v590 = vadd.f32 %v206, %v398
    %v591 = vadd.f32 %v207, %v399
    %v592 = vadd.f32 %v208, %v400
    %v593 = vadd.f32 %v209, %v401
    %v594 = vadd.f32 %v210, %v402
    %v595 = vadd.f32 %v211, %v403
    %v596 = vadd.f32 %v212, %v404
    %v597 = vadd.f32 %v213, %v405
    %v598 = vadd.f32 %v214, %v406
    %v599 = vadd.f32 %v215, %v407
    %v600 = vadd.f32 %v216, %v408
    %v601 = vadd.f32 %v217, %v409
    %v602 = vadd.f32 %v218, %v410
    %v603 = vadd.f32 %v219, %v411
    %v604 = vadd.f32 %v220, %v412
    %v605 = vadd.f32 %v221, %v413
    %v606 = vadd.f32 %v222, %v414
    %v607 = vadd.f32 %v223, %v415
    %v608 = vadd.f32 %v224, %v416
    %v609 = vadd.f32 %v225, %v417
    %v610 = vadd.f32 %v226, %v418
    %v611 = vadd.f32 %v227, %v419
    %v612 = vadd.f32 %v228, %v420
    %v613 = vadd.f32 %v229, %v421
    %v614 = vadd.f32 %v230, %v422
    %v615 = vadd.f32 %v231, %v423
    %616 = vst [vmem:[#allocation7] sm:$0xff] %v424
    %617 = vst [vmem:[#allocation7 + $0x8] sm:$0xff] %v425
    %618 = vst [vmem:[#allocation7 + $0x10] sm:$0xff] %v426
    %619 = vst [vmem:[#allocation7 + $0x18] sm:$0xff] %v427
    %620 = vst [vmem:[#allocation7 + $0x20] sm:$0xff] %v428
    %621 = vst [vmem:[#allocation7 + $0x28] sm:$0xff] %v429
    %622 = vst [vmem:[#allocation7 + $0x30] sm:$0xff] %v430
    %623 = vst [vmem:[#allocation7 + $0x38] sm:$0xff] %v431
    %624 = vst [vmem:[#allocation7 + $0x40] sm:$0xff] %v432
    %625 = vst [vmem:[#allocation7 + $0x48] sm:$0xff] %v433
    %626 = vst [vmem:[#allocation7 + $0x50] sm:$0xff] %v434
    %627 = vst [vmem:[#allocation7 + $0x58] sm:$0xff] %v435
    %628 = vst [vmem:[#allocation7 + $0x60] sm:$0xff] %v436
    %629 = vst [vmem:[#allocation7 + $0x68] sm:$0xff] %v437
    %630 = vst [vmem:[#allocation7 + $0x70] sm:$0xff] %v438
    %631 = vst [vmem:[#allocation7 + $0x78] sm:$0xff] %v439
    %632 = vst [vmem:[#allocation7 + $0x80] sm:$0xff] %v440
    %633 = vst [vmem:[#allocation7 + $0x88] sm:$0xff] %v441
    %634 = vst [vmem:[#allocation7 + $0x90] sm:$0xff] %v442
    %635 = vst [vmem:[#allocation7 + $0x98] sm:$0xff] %v443
    %636 = vst [vmem:[#allocation7 + $0xa0] sm:$0xff] %v444
    %637 = vst [vmem:[#allocation7 + $0xa8] sm:$0xff] %v445
    %638 = vst [vmem:[#allocation7 + $0xb0] sm:$0xff] %v446
    %639 = vst [vmem:[#allocation7 + $0xb8] sm:$0xff] %v447
    %640 = vst [vmem:[#allocation7 + $0xc0] sm:$0xff] %v448
    %641 = vst [vmem:[#allocation7 + $0xc8] sm:$0xff] %v449
    %642 = vst [vmem:[#allocation7 + $0xd0] sm:$0xff] %v450
    %643 = vst [vmem:[#allocation7 + $0xd8] sm:$0xff] %v451
    %644 = vst [vmem:[#allocation7 + $0xe0] sm:$0xff] %v452
    %645 = vst [vmem:[#allocation7 + $0xe8] sm:$0xff] %v453
    %646 = vst [vmem:[#allocation7 + $0xf0] sm:$0xff] %v454
    %647 = vst [vmem:[#allocation7 + $0xf8] sm:$0xff] %v455
    %648 = vst [vmem:[#allocation7 + $0x100] sm:$0xff] %v456
    %649 = vst [vmem:[#allocation7 + $0x108] sm:$0xff] %v457
    %650 = vst [vmem:[#allocation7 + $0x110] sm:$0xff] %v458
    %651 = vst [vmem:[#allocation7 + $0x118] sm:$0xff] %v459
    %652 = vst [vmem:[#allocation7 + $0x120] sm:$0xff] %v460
    %653 = vst [vmem:[#allocation7 + $0x128] sm:$0xff] %v461
    %654 = vst [vmem:[#allocation7 + $0x130] sm:$0xff] %v462
    %655 = vst [vmem:[#allocation7 + $0x138] sm:$0xff] %v463
    %656 = vst [vmem:[#allocation7 + $0x140] sm:$0xff] %v464
    %657 = vst [vmem:[#allocation7 + $0x148] sm:$0xff] %v465
    %658 = vst [vmem:[#allocation7 + $0x150] sm:$0xff] %v466
    %659 = vst [vmem:[#allocation7 + $0x158] sm:$0xff] %v467
    %660 = vst [vmem:[#allocation7 + $0x160] sm:$0xff] %v468
    %661 = vst [vmem:[#allocation7 + $0x168] sm:$0xff] %v469
    %662 = vst [vmem:[#allocation7 + $0x170] sm:$0xff] %v470
    %663 = vst [vmem:[#allocation7 + $0x178] sm:$0xff] %v471
    %664 = vst [vmem:[#allocation7 + $0x180] sm:$0xff] %v472
    %665 = vst [vmem:[#allocation7 + $0x188] sm:$0xff] %v473
    %666 = vst [vmem:[#allocation7 + $0x190] sm:$0xff] %v474
    %667 = vst [vmem:[#allocation7 + $0x198] sm:$0xff] %v475
    %668 = vst [vmem:[#allocation7 + $0x1a0] sm:$0xff] %v476
    %669 = vst [vmem:[#allocation7 + $0x1a8] sm:$0xff] %v477
    %670 = vst [vmem:[#allocation7 + $0x1b0] sm:$0xff] %v478
    %671 = vst [vmem:[#allocation7 + $0x1b8] sm:$0xff] %v479
    %672 = vst [vmem:[#allocation7 + $0x1c0] sm:$0xff] %v480
    %673 = vst [vmem:[#allocation7 + $0x1c8] sm:$0xff] %v481
    %674 = vst [vmem:[#allocation7 + $0x1d0] sm:$0xff] %v482
    %675 = vst [vmem:[#allocation7 + $0x1d8] sm:$0xff] %v483
    %676 = vst [vmem:[#allocation7 + $0x1e0] sm:$0xff] %v484
    %677 = vst [vmem:[#allocation7 + $0x1e8] sm:$0xff] %v485
    %678 = vst [vmem:[#allocation7 + $0x1f0] sm:$0xff] %v486
    %679 = vst [vmem:[#allocation7 + $0x1f8] sm:$0xff] %v487
    %680 = vst [vmem:[#allocation7 + $0x200] sm:$0xff] %v488
    %681 = vst [vmem:[#allocation7 + $0x208] sm:$0xff] %v489
    %682 = vst [vmem:[#allocation7 + $0x210] sm:$0xff] %v490
    %683 = vst [vmem:[#allocation7 + $0x218] sm:$0xff] %v491
    %684 = vst [vmem:[#allocation7 + $0x220] sm:$0xff] %v492
    %685 = vst [vmem:[#allocation7 + $0x228] sm:$0xff] %v493
    %686 = vst [vmem:[#allocation7 + $0x230] sm:$0xff] %v494
    %687 = vst [vmem:[#allocation7 + $0x238] sm:$0xff] %v495
    %688 = vst [vmem:[#allocation7 + $0x240] sm:$0xff] %v496
    %689 = vst [vmem:[#allocation7 + $0x248] sm:$0xff] %v497
    %690 = vst [vmem:[#allocation7 + $0x250] sm:$0xff] %v498
    %691 = vst [vmem:[#allocation7 + $0x258] sm:$0xff] %v499
    %692 = vst [vmem:[#allocation7 + $0x260] sm:$0xff] %v500
    %693 = vst [vmem:[#allocation7 + $0x268] sm:$0xff] %v501
    %694 = vst [vmem:[#allocation7 + $0x270] sm:$0xff] %v502
    %695 = vst [vmem:[#allocation7 + $0x278] sm:$0xff] %v503
    %696 = vst [vmem:[#allocation7 + $0x280] sm:$0xff] %v504
    %697 = vst [vmem:[#allocation7 + $0x288] sm:$0xff] %v505
    %698 = vst [vmem:[#allocation7 + $0x290] sm:$0xff] %v506
    %699 = vst [vmem:[#allocation7 + $0x298] sm:$0xff] %v507
    %700 = vst [vmem:[#allocation7 + $0x2a0] sm:$0xff] %v508
    %701 = vst [vmem:[#allocation7 + $0x2a8] sm:$0xff] %v509
    %702 = vst [vmem:[#allocation7 + $0x2b0] sm:$0xff] %v510
    %703 = vst [vmem:[#allocation7 + $0x2b8] sm:$0xff] %v511
    %704 = vst [vmem:[#allocation7 + $0x2c0] sm:$0xff] %v512
    %705 = vst [vmem:[#allocation7 + $0x2c8] sm:$0xff] %v513
    %706 = vst [vmem:[#allocation7 + $0x2d0] sm:$0xff] %v514
    %707 = vst [vmem:[#allocation7 + $0x2d8] sm:$0xff] %v515
    %708 = vst [vmem:[#allocation7 + $0x2e0] sm:$0xff] %v516
    %709 = vst [vmem:[#allocation7 + $0x2e8] sm:$0xff] %v517
    %710 = vst [vmem:[#allocation7 + $0x2f0] sm:$0xff] %v518
    %711 = vst [vmem:[#allocation7 + $0x2f8] sm:$0xff] %v519
    %712 = vst [vmem:[#allocation7 + $0x300] sm:$0xff] %v520
    %713 = vst [vmem:[#allocation7 + $0x308] sm:$0xff] %v521
    %714 = vst [vmem:[#allocation7 + $0x310] sm:$0xff] %v522
    %715 = vst [vmem:[#allocation7 + $0x318] sm:$0xff] %v523
    %716 = vst [vmem:[#allocation7 + $0x320] sm:$0xff] %v524
    %717 = vst [vmem:[#allocation7 + $0x328] sm:$0xff] %v525
    %718 = vst [vmem:[#allocation7 + $0x330] sm:$0xff] %v526
    %719 = vst [vmem:[#allocation7 + $0x338] sm:$0xff] %v527
    %720 = vst [vmem:[#allocation7 + $0x340] sm:$0xff] %v528
    %721 = vst [vmem:[#allocation7 + $0x348] sm:$0xff] %v529
    %722 = vst [vmem:[#allocation7 + $0x350] sm:$0xff] %v530
    %723 = vst [vmem:[#allocation7 + $0x358] sm:$0xff] %v531
    %724 = vst [vmem:[#allocation7 + $0x360] sm:$0xff] %v532
    %725 = vst [vmem:[#allocation7 + $0x368] sm:$0xff] %v533
    %726 = vst [vmem:[#allocation7 + $0x370] sm:$0xff] %v534
    %727 = vst [vmem:[#allocation7 + $0x378] sm:$0xff] %v535
    %728 = vst [vmem:[#allocation7 + $0x380] sm:$0xff] %v536
    %729 = vst [vmem:[#allocation7 + $0x388] sm:$0xff] %v537
    %730 = vst [vmem:[#allocation7 + $0x390] sm:$0xff] %v538
    %731 = vst [vmem:[#allocation7 + $0x398] sm:$0xff] %v539
    %732 = vst [vmem:[#allocation7 + $0x3a0] sm:$0xff] %v540
    %733 = vst [vmem:[#allocation7 + $0x3a8] sm:$0xff] %v541
    %734 = vst [vmem:[#allocation7 + $0x3b0] sm:$0xff] %v542
    %735 = vst [vmem:[#allocation7 + $0x3b8] sm:$0xff] %v543
    %736 = vst [vmem:[#allocation7 + $0x3c0] sm:$0xff] %v544
    %737 = vst [vmem:[#allocation7 + $0x3c8] sm:$0xff] %v545
    %738 = vst [vmem:[#allocation7 + $0x3d0] sm:$0xff] %v546
    %739 = vst [vmem:[#allocation7 + $0x3d8] sm:$0xff] %v547
    %740 = vst [vmem:[#allocation7 + $0x3e0] sm:$0xff] %v548
    %741 = vst [vmem:[#allocation7 + $0x3e8] sm:$0xff] %v549
    %742 = vst [vmem:[#allocation7 + $0x3f0] sm:$0xff] %v550
    %743 = vst [vmem:[#allocation7 + $0x3f8] sm:$0xff] %v551
    %744 = vst [vmem:[#allocation7 + $0x400] sm:$0xff] %v552
    %745 = vst [vmem:[#allocation7 + $0x408] sm:$0xff] %v553
    %746 = vst [vmem:[#allocation7 + $0x410] sm:$0xff] %v554
    %747 = vst [vmem:[#allocation7 + $0x418] sm:$0xff] %v555
    %748 = vst [vmem:[#allocation7 + $0x420] sm:$0xff] %v556
    %749 = vst [vmem:[#allocation7 + $0x428] sm:$0xff] %v557
    %750 = vst [vmem:[#allocation7 + $0x430] sm:$0xff] %v558
    %751 = vst [vmem:[#allocation7 + $0x438] sm:$0xff] %v559
    %752 = vst [vmem:[#allocation7 + $0x440] sm:$0xff] %v560
    %753 = vst [vmem:[#allocation7 + $0x448] sm:$0xff] %v561
    %754 = vst [vmem:[#allocation7 + $0x450] sm:$0xff] %v562
    %755 = vst [vmem:[#allocation7 + $0x458] sm:$0xff] %v563
    %756 = vst [vmem:[#allocation7 + $0x460] sm:$0xff] %v564
    %757 = vst [vmem:[#allocation7 + $0x468] sm:$0xff] %v565
    %758 = vst [vmem:[#allocation7 + $0x470] sm:$0xff] %v566
    %759 = vst [vmem:[#allocation7 + $0x478] sm:$0xff] %v567
    %760 = vst [vmem:[#allocation7 + $0x480] sm:$0xff] %v568
    %761 = vst [vmem:[#allocation7 + $0x488] sm:$0xff] %v569
    %762 = vst [vmem:[#allocation7 + $0x490] sm:$0xff] %v570
    %763 = vst [vmem:[#allocation7 + $0x498] sm:$0xff] %v571
    %764 = vst [vmem:[#allocation7 + $0x4a0] sm:$0xff] %v572
    %765 = vst [vmem:[#allocation7 + $0x4a8] sm:$0xff] %v573
    %766 = vst [vmem:[#allocation7 + $0x4b0] sm:$0xff] %v574
    %767 = vst [vmem:[#allocation7 + $0x4b8] sm:$0xff] %v575
    %768 = vst [vmem:[#allocation7 + $0x4c0] sm:$0xff] %v576
    %769 = vst [vmem:[#allocation7 + $0x4c8] sm:$0xff] %v577
    %770 = vst [vmem:[#allocation7 + $0x4d0] sm:$0xff] %v578
    %771 = vst [vmem:[#allocation7 + $0x4d8] sm:$0xff] %v579
    %772 = vst [vmem:[#allocation7 + $0x4e0] sm:$0xff] %v580
    %773 = vst [vmem:[#allocation7 + $0x4e8] sm:$0xff] %v581
    %774 = vst [vmem:[#allocation7 + $0x4f0] sm:$0xff] %v582
    %775 = vst [vmem:[#allocation7 + $0x4f8] sm:$0xff] %v583
    %776 = vst [vmem:[#allocation7 + $0x500] sm:$0xff] %v584
    %777 = vst [vmem:[#allocation7 + $0x508] sm:$0xff] %v585
    %778 = vst [vmem:[#allocation7 + $0x510] sm:$0xff] %v586
    %779 = vst [vmem:[#allocation7 + $0x518] sm:$0xff] %v587
    %780 = vst [vmem:[#allocation7 + $0x520] sm:$0xff] %v588
    %781 = vst [vmem:[#allocation7 + $0x528] sm:$0xff] %v589
    %782 = vst [vmem:[#allocation7 + $0x530] sm:$0xff] %v590
    %783 = vst [vmem:[#allocation7 + $0x538] sm:$0xff] %v591
    %784 = vst [vmem:[#allocation7 + $0x540] sm:$0xff] %v592
    %785 = vst [vmem:[#allocation7 + $0x548] sm:$0xff] %v593
    %786 = vst [vmem:[#allocation7 + $0x550] sm:$0xff] %v594
    %787 = vst [vmem:[#allocation7 + $0x558] sm:$0xff] %v595
    %788 = vst [vmem:[#allocation7 + $0x560] sm:$0xff] %v596
    %789 = vst [vmem:[#allocation7 + $0x568] sm:$0xff] %v597
    %790 = vst [vmem:[#allocation7 + $0x570] sm:$0xff] %v598
    %791 = vst [vmem:[#allocation7 + $0x578] sm:$0xff] %v599
    %792 = vst [vmem:[#allocation7 + $0x580] sm:$0xff] %v600
    %793 = vst [vmem:[#allocation7 + $0x588] sm:$0xff] %v601
    %794 = vst [vmem:[#allocation7 + $0x590] sm:$0xff] %v602
    %795 = vst [vmem:[#allocation7 + $0x598] sm:$0xff] %v603
    %796 = vst [vmem:[#allocation7 + $0x5a0] sm:$0xff] %v604
    %797 = vst [vmem:[#allocation7 + $0x5a8] sm:$0xff] %v605
    %798 = vst [vmem:[#allocation7 + $0x5b0] sm:$0xff] %v606
    %799 = vst [vmem:[#allocation7 + $0x5b8] sm:$0xff] %v607
    %800 = vst [vmem:[#allocation7 + $0x5c0] sm:$0xff] %v608
    %801 = vst [vmem:[#allocation7 + $0x5c8] sm:$0xff] %v609
    %802 = vst [vmem:[#allocation7 + $0x5d0] sm:$0xff] %v610
    %803 = vst [vmem:[#allocation7 + $0x5d8] sm:$0xff] %v611
    %804 = vst [vmem:[#allocation7 + $0x5e0] sm:$0xff] %v612
    %805 = vst [vmem:[#allocation7 + $0x5e8] sm:$0xff] %v613
    %806 = vst [vmem:[#allocation7 + $0x5f0] sm:$0xff] %v614
    %807 = vst [vmem:[#allocation7 + $0x5f8] sm:$0xff] %v615
    // Predicated region
    $region18: #{tpu_custom_call.1} parent=1 // pred_check
      _
    $region19: #{tpu_custom_call.1} parent=1 // pred_check_branch
      %809 = sbr.rel (0) target = $region21
    $region20: #{tpu_custom_call.1} parent=1 // pred_region
      %s811 = ssub.s32 24576, 24576
      %812 = vsyncadd [#allocation4], %s811
      %s813 = sshll.u32 [#allocation7], 4
      %s814 = int_to_ptr.vmem [resolvable:$true] %s813
      %819 = dma.vmem_to_hbm [thread:$0]  %s814, 24576, %s2, [#allocation4], 8192, 8192, 512
    $region21: #{tpu_custom_call.1} parent=1 // pred_fallthru
      _
    // Predicated region
    $region22: #{tpu_custom_call.1} parent=1 // pred_check
      _
    $region23: #{tpu_custom_call.1} parent=1 // pred_check_branch
      %821 = sbr.rel (0) target = $region25
    $region24: #{tpu_custom_call.1} parent=1 // pred_region
      %822 = dma.done [#allocation4], 24576
    $region25: #{tpu_custom_call.1} parent=1 // pred_fallthru
      _
    %823 = vsyncpa [#allocation3], 1
    %824 = vsyncpa [#allocation6], 1
    %825 = vsyncpa [#allocation4], 1

</llo_original>
